<compile_context>
chip_gen: v5e
topology: v5e:2x2
jax: 0.10.0
libtpu: 0.0.40
codegen_flags: <defaults>
</compile_context>

<pallas_src>
import jax
import jax.numpy as jnp
from jax.experimental import pallas as pl
from jax.experimental.pallas import tpu as pltpu


def _round_up(x, m):
    return (x + m - 1) // m * m


# ----------------- fused encoder + gather + decoder kernel -----------------
def _fused_kernel(d_ref, m_ref,                    # scalar-prefetch (SMEM): int32 [P_pad]
                  a_ref, x_ref, we_ref, wd_ref,    # VMEM inputs (bf16, padded)
                  o_ref,                           # VMEM output f32 [8, P_pad]
                  h_scr, hw_scr, hd_scr, hm_scr):  # VMEM scratch (f32)
    f32 = jnp.float32
    bf16 = jnp.bfloat16

    # ---- encoder: h = ReLU(A @ X @ W_enc)  (MXU, bf16 operands, f32 accumulation)
    xw = jnp.dot(x_ref[...], we_ref[...], preferred_element_type=f32)         # [N, H]
    h = jnp.maximum(
        jnp.dot(a_ref[...], xw.astype(bf16), preferred_element_type=f32), 0.0)
    h_scr[...] = h

    # ---- hoisted decoder projection: hW = h @ W_dec once per NODE (not per pair)
    hw_scr[...] = jnp.dot(h.astype(bf16), wd_ref[...], preferred_element_type=f32)

    # ---- gather pair rows from the VMEM-resident buffers (prefetched indices)
    n_pairs = d_ref.shape[0]

    @pl.loop(0, n_pairs)
    def _(p):
        hd_scr[pl.ds(p, 1), :] = hw_scr[pl.ds(d_ref[p], 1), :]
        hm_scr[pl.ds(p, 1), :] = h_scr[pl.ds(m_ref[p], 1), :]

    # ---- decoder: score_p = sum_h (hW[d_p] * h[m_p]), emitted lane-dense.
    # Contract the H axis with a ones-vector on the MXU so the pair axis lands
    # on the LANE axis of the output ([8, P_pad], full-vreg unmasked stores).
    prod = hd_scr[...] * hm_scr[...]                                    # [P_pad, H_pad]
    ones = jnp.ones((8, prod.shape[1]), f32)
    scores = jax.lax.dot_general(                                       # [8, P_pad]
        ones, prod,
        dimension_numbers=(((1,), (1,)), ((), ())),
        preferred_element_type=f32)
    o_ref[...] = jax.nn.sigmoid(scores).astype(o_ref.dtype)


# ------------------------------ wrapper ------------------------------------
def model_forward(adj, feats, w_enc, w_dec, diseases, mirnas):
    N = adj.shape[0]
    F_in = feats.shape[1]
    H = w_enc.shape[1]
    P = diseases.shape[0]

    # Pad everything to lane-dense (x128) / sublane-aligned shapes; the zero
    # padding is mathematically inert (padded nodes/features/pairs contribute 0
    # and padded pair scores are sliced off below).
    N_pad = _round_up(N, 128)
    F_pad = _round_up(F_in, 128)
    H_pad = _round_up(H, 128)
    P_pad = _round_up(P, 128)

    bf16 = jnp.bfloat16
    adj_p = jnp.pad(adj, ((0, N_pad - N), (0, N_pad - N))).astype(bf16)
    x_p = jnp.pad(feats, ((0, N_pad - N), (0, F_pad - F_in))).astype(bf16)
    we_p = jnp.pad(w_enc, ((0, F_pad - F_in), (0, H_pad - H))).astype(bf16)
    wd_p = jnp.pad(w_dec, ((0, H_pad - H), (0, H_pad - H))).astype(bf16)
    d_p = jnp.pad(diseases.astype(jnp.int32), (0, P_pad - P))
    m_p = jnp.pad(mirnas.astype(jnp.int32), (0, P_pad - P))

    grid_spec = pltpu.PrefetchScalarGridSpec(
        num_scalar_prefetch=2,
        grid=(1,),
        in_specs=[
            pl.BlockSpec((N_pad, N_pad), lambda i, d, m: (0, 0)),   # A
            pl.BlockSpec((N_pad, F_pad), lambda i, d, m: (0, 0)),   # X
            pl.BlockSpec((F_pad, H_pad), lambda i, d, m: (0, 0)),   # W_enc
            pl.BlockSpec((H_pad, H_pad), lambda i, d, m: (0, 0)),   # W_dec
        ],
        out_specs=pl.BlockSpec((8, P_pad), lambda i, d, m: (0, 0)),
        scratch_shapes=[
            pltpu.VMEM((N_pad, H_pad), jnp.float32),   # h
            pltpu.VMEM((N_pad, H_pad), jnp.float32),   # h @ W_dec
            pltpu.VMEM((P_pad, H_pad), jnp.float32),   # gathered hW[diseases]
            pltpu.VMEM((P_pad, H_pad), jnp.float32),   # gathered h[mirnas]
        ],
    )

    out = pl.pallas_call(
        _fused_kernel,
        out_shape=jax.ShapeDtypeStruct((8, P_pad), jnp.float32),
        grid_spec=grid_spec,
        compiler_params=pltpu.CompilerParams(dimension_semantics=("arbitrary",)),
    )(d_p, m_p, adj_p, x_p, we_p, wd_p)

    return out[0, :P]   # all 8 sublane rows are identical; keep row 0, real pairs only


# ------------------------------ test ----------------------------------------
if __name__ == "__main__":
    key = jax.random.PRNGKey(0)
    k_adj, k_x, k_we, k_wd, k_d, k_m = jax.random.split(key, 6)

    N, F, H, P = 16, 32, 32, 8  # nodes, in-features, hidden, pair count

    # symmetric, row-normalized adjacency (deterministic)
    a_raw = (jax.random.uniform(k_adj, (N, N)) > 0.7).astype(jnp.float32)
    a_sym = jnp.clip(a_raw + a_raw.T + jnp.eye(N, dtype=jnp.float32), 0.0, 1.0)
    adj = a_sym / jnp.sum(a_sym, axis=1, keepdims=True)

    feats = jax.random.normal(k_x, (N, F), dtype=jnp.float32)
    w_enc = jax.random.normal(k_we, (F, H), dtype=jnp.float32) * 0.1
    w_dec = jax.random.normal(k_wd, (H, H), dtype=jnp.float32) * 0.1

    diseases = jax.random.randint(k_d, (P,), 0, N)
    mirnas = jax.random.randint(k_m, (P,), 0, N)

    fwd = jax.jit(model_forward)
    out = fwd(adj, feats, w_enc, w_dec, diseases, mirnas)
    jax.block_until_ready(out)

    # pure-JAX f32 reference. The kernel uses bf16 matmul operands with f32
    # accumulation, so compare with a bf16-appropriate tolerance.
    h_ref = jnp.maximum(adj @ feats @ w_enc, 0.0)
    ref = jax.nn.sigmoid(jnp.sum((h_ref[diseases] @ w_dec) * h_ref[mirnas], axis=-1))
    assert out.shape == ref.shape, (out.shape, ref.shape)
    assert jnp.allclose(out, ref, atol=2e-2, rtol=2e-2), (out, ref)

    print("KERNEL_OK")
</pallas_src>

<mosaic_0001>
module attributes {stable_mosaic.version = 11 : i64} {
  func.func @_fused_kernel(%arg0: i32, %arg1: memref<128xi32, #tpu.memory_space<smem>>, %arg2: memref<128xi32, #tpu.memory_space<smem>>, %arg3: memref<128x128xbf16, #tpu.memory_space<vmem>>, %arg4: memref<128x128xbf16, #tpu.memory_space<vmem>>, %arg5: memref<128x128xbf16, #tpu.memory_space<vmem>>, %arg6: memref<128x128xbf16, #tpu.memory_space<vmem>>, %arg7: memref<8x128xf32, #tpu.memory_space<vmem>>, %arg8: memref<128x128xf32, #tpu.memory_space<vmem>>, %arg9: memref<128x128xf32, #tpu.memory_space<vmem>>, %arg10: memref<128x128xf32, #tpu.memory_space<vmem>>, %arg11: memref<128x128xf32, #tpu.memory_space<vmem>>) attributes {dimension_semantics = [#tpu.dimension_semantics<arbitrary>], iteration_bounds = array<i64: 1>, scalar_prefetch = 2 : i64, scratch_operands = 4 : i64, tpu.core_type = #tpu.core_type<tc>, window_params = [{pipeline_mode = #tpu.pipeline_mode<synchronous>, transform_indices = @transform_0, window_bounds = array<i64: 128, 128>}, {pipeline_mode = #tpu.pipeline_mode<synchronous>, transform_indices = @transform_1, window_bounds = array<i64: 128, 128>}, {pipeline_mode = #tpu.pipeline_mode<synchronous>, transform_indices = @transform_2, window_bounds = array<i64: 128, 128>}, {pipeline_mode = #tpu.pipeline_mode<synchronous>, transform_indices = @transform_3, window_bounds = array<i64: 128, 128>}, {pipeline_mode = #tpu.pipeline_mode<synchronous>, transform_indices = @transform_4, window_bounds = array<i64: 8, 128>}]} {
    %c0 = arith.constant 0 : index
    %c0_0 = arith.constant 0 : index
    %0 = vector.load %arg4[%c0, %c0_0] : memref<128x128xbf16, #tpu.memory_space<vmem>>, vector<128x128xbf16>
    %c0_1 = arith.constant 0 : index
    %c0_2 = arith.constant 0 : index
    %1 = vector.load %arg5[%c0_1, %c0_2] : memref<128x128xbf16, #tpu.memory_space<vmem>>, vector<128x128xbf16>
    %cst = arith.constant dense<0.000000e+00> : vector<128x128xf32>
    %2 = tpu.matmul %0, %1, %cst {dimension_numbers = #tpu.dot_dimension_numbers<[1], [0], [0], [1], [0, 0, 1, 1], [], []>} : vector<128x128xbf16>, vector<128x128xbf16>, vector<128x128xf32> -> vector<128x128xf32>
    %c0_3 = arith.constant 0 : index
    %c0_4 = arith.constant 0 : index
    %3 = vector.load %arg3[%c0_3, %c0_4] : memref<128x128xbf16, #tpu.memory_space<vmem>>, vector<128x128xbf16>
    %4 = arith.truncf %2 : vector<128x128xf32> to vector<128x128xbf16>
    %cst_5 = arith.constant dense<0.000000e+00> : vector<128x128xf32>
    %5 = tpu.matmul %3, %4, %cst_5 {dimension_numbers = #tpu.dot_dimension_numbers<[1], [0], [0], [1], [0, 0, 1, 1], [], []>} : vector<128x128xbf16>, vector<128x128xbf16>, vector<128x128xf32> -> vector<128x128xf32>
    %cst_6 = arith.constant 0.000000e+00 : f32
    %6 = vector.broadcast %cst_6 : f32 to vector<128x128xf32>
    %7 = arith.maximumf %5, %6 : vector<128x128xf32>
    %c0_7 = arith.constant 0 : index
    %c0_8 = arith.constant 0 : index
    %8 = vector.load %arg8[%c0_7, %c0_8] : memref<128x128xf32, #tpu.memory_space<vmem>>, vector<128x128xf32>
    tpu.vector_store %arg8[%c0_7, %c0_8], %7 {strides = array<i32>} : memref<128x128xf32, #tpu.memory_space<vmem>>, vector<128x128xf32>,
    %9 = arith.truncf %7 : vector<128x128xf32> to vector<128x128xbf16>
    %c0_9 = arith.constant 0 : index
    %c0_10 = arith.constant 0 : index
    %10 = vector.load %arg6[%c0_9, %c0_10] : memref<128x128xbf16, #tpu.memory_space<vmem>>, vector<128x128xbf16>
    %cst_11 = arith.constant dense<0.000000e+00> : vector<128x128xf32>
    %11 = tpu.matmul %9, %10, %cst_11 {dimension_numbers = #tpu.dot_dimension_numbers<[1], [0], [0], [1], [0, 0, 1, 1], [], []>} : vector<128x128xbf16>, vector<128x128xbf16>, vector<128x128xf32> -> vector<128x128xf32>
    %c0_12 = arith.constant 0 : index
    %c0_13 = arith.constant 0 : index
    %12 = vector.load %arg9[%c0_12, %c0_13] : memref<128x128xf32, #tpu.memory_space<vmem>>, vector<128x128xf32>
    tpu.vector_store %arg9[%c0_12, %c0_13], %11 {strides = array<i32>} : memref<128x128xf32, #tpu.memory_space<vmem>>, vector<128x128xf32>,
    %c0_i32 = arith.constant 0 : i32
    %c128_i32 = arith.constant 128 : i32
    %13 = arith.addi %c0_i32, %c128_i32 : i32
    %c1_i32 = arith.constant 1 : i32
    scf.for %arg12 = %c0_i32 to %13 step %c1_i32  : i32 {
      %c1_i32_24 = arith.constant 1 : i32
      %25 = arith.muli %arg12, %c1_i32_24 : i32
      %c0_i32_25 = arith.constant 0 : i32
      %26 = arith.addi %c0_i32_25, %25 : i32
      %27 = arith.index_cast %26 : i32 to index
      %28 = memref.load %arg1[%27] : memref<128xi32, #tpu.memory_space<smem>>
      %29 = arith.index_cast %28 : i32 to index
      %c0_26 = arith.constant 0 : index
      %30 = vector.load %arg9[%29, %c0_26] : memref<128x128xf32, #tpu.memory_space<vmem>>, vector<1x128xf32>
      %31 = arith.index_cast %26 : i32 to index
      %c0_27 = arith.constant 0 : index
      %32 = vector.load %arg10[%31, %c0_27] : memref<128x128xf32, #tpu.memory_space<vmem>>, vector<1x128xf32>
      tpu.vector_store %arg10[%31, %c0_27], %30 {strides = array<i32>} : memref<128x128xf32, #tpu.memory_space<vmem>>, vector<1x128xf32>,
      %33 = arith.index_cast %26 : i32 to index
      %34 = memref.load %arg2[%33] : memref<128xi32, #tpu.memory_space<smem>>
      %35 = arith.index_cast %34 : i32 to index
      %c0_28 = arith.constant 0 : index
      %36 = vector.load %arg8[%35, %c0_28] : memref<128x128xf32, #tpu.memory_space<vmem>>, vector<1x128xf32>
      %37 = arith.index_cast %26 : i32 to index
      %c0_29 = arith.constant 0 : index
      %38 = vector.load %arg11[%37, %c0_29] : memref<128x128xf32, #tpu.memory_space<vmem>>, vector<1x128xf32>
      tpu.vector_store %arg11[%37, %c0_29], %36 {strides = array<i32>} : memref<128x128xf32, #tpu.memory_space<vmem>>, vector<1x128xf32>,
    }
    %c128_i32_14 = arith.constant 128 : i32
    %c0_15 = arith.constant 0 : index
    %c0_16 = arith.constant 0 : index
    %14 = vector.load %arg10[%c0_15, %c0_16] : memref<128x128xf32, #tpu.memory_space<vmem>>, vector<128x128xf32>
    %c0_17 = arith.constant 0 : index
    %c0_18 = arith.constant 0 : index
    %15 = vector.load %arg11[%c0_17, %c0_18] : memref<128x128xf32, #tpu.memory_space<vmem>>, vector<128x128xf32>
    %16 = arith.mulf %14, %15 : vector<128x128xf32>
    %cst_19 = arith.constant 1.000000e+00 : f32
    %17 = vector.broadcast %cst_19 : f32 to vector<8x128xf32>
    %cst_20 = arith.constant dense<0.000000e+00> : vector<8x128xf32>
    %18 = tpu.matmul %17, %16, %cst_20 {dimension_numbers = #tpu.dot_dimension_numbers<[1], [1], [0], [0], [0, 0, 1, 0], [], []>} : vector<8x128xf32>, vector<128x128xf32>, vector<8x128xf32> -> vector<8x128xf32>
    %19 = arith.negf %18 : vector<8x128xf32>
    %20 = math.exp %19 : vector<8x128xf32>
    %cst_21 = arith.constant 1.000000e+00 : f32
    %21 = vector.broadcast %cst_21 : f32 to vector<8x128xf32>
    %22 = arith.addf %21, %20 : vector<8x128xf32>
    %23 = arith.divf %21, %22 : vector<8x128xf32>
    %c0_22 = arith.constant 0 : index
    %c0_23 = arith.constant 0 : index
    %24 = vector.load %arg7[%c0_22, %c0_23] : memref<8x128xf32, #tpu.memory_space<vmem>>, vector<8x128xf32>
    tpu.vector_store %arg7[%c0_22, %c0_23], %23 {strides = array<i32>} : memref<8x128xf32, #tpu.memory_space<vmem>>, vector<8x128xf32>,
    return
  }
  func.func @transform_0(%arg0: i32, %arg1: memref<128xi32, #tpu.memory_space<smem>>, %arg2: memref<128xi32, #tpu.memory_space<smem>>) -> (i32, i32) {
    %c0_i32 = arith.constant 0 : i32
    %c0_i32_0 = arith.constant 0 : i32
    %c0_i32_1 = arith.constant 0 : i32
    return %c0_i32, %c0_i32_0 : i32, i32
  }
  func.func @transform_1(%arg0: i32, %arg1: memref<128xi32, #tpu.memory_space<smem>>, %arg2: memref<128xi32, #tpu.memory_space<smem>>) -> (i32, i32) {
    %c0_i32 = arith.constant 0 : i32
    %c0_i32_0 = arith.constant 0 : i32
    %c0_i32_1 = arith.constant 0 : i32
    return %c0_i32, %c0_i32_0 : i32, i32
  }
  func.func @transform_2(%arg0: i32, %arg1: memref<128xi32, #tpu.memory_space<smem>>, %arg2: memref<128xi32, #tpu.memory_space<smem>>) -> (i32, i32) {
    %c0_i32 = arith.constant 0 : i32
    %c0_i32_0 = arith.constant 0 : i32
    %c0_i32_1 = arith.constant 0 : i32
    return %c0_i32, %c0_i32_0 : i32, i32
  }
  func.func @transform_3(%arg0: i32, %arg1: memref<128xi32, #tpu.memory_space<smem>>, %arg2: memref<128xi32, #tpu.memory_space<smem>>) -> (i32, i32) {
    %c0_i32 = arith.constant 0 : i32
    %c0_i32_0 = arith.constant 0 : i32
    %c0_i32_1 = arith.constant 0 : i32
    return %c0_i32, %c0_i32_0 : i32, i32
  }
  func.func @transform_4(%arg0: i32, %arg1: memref<128xi32, #tpu.memory_space<smem>>, %arg2: memref<128xi32, #tpu.memory_space<smem>>) -> (i32, i32) {
    %c0_i32 = arith.constant 0 : i32
    %c0_i32_0 = arith.constant 0 : i32
    %c0_i32_1 = arith.constant 0 : i32
    return %c0_i32, %c0_i32_0 : i32, i32
  }
}

</mosaic_0001>

<llo_original>
// kernel: model_forward.1
$region0: #{model_forward.1}
  #allocation0 [shape = 'u32[]', space=smem, size = 0x4, offset = 0x4, fixed_abs, tag = 'smem constant byte address 0x4 - core index']
  #allocation1 [shape = 'u32[72,128]{1,0:T(1,128)}', space=vmem, size = 0x9000, scoped, tag = 'internal scratch']
  #allocation2 [shape = 'f32[128,128]{1,0:T(8,128)}', space=vmem, size = 0x10000, scoped, tag = 'scratch operand']
  #allocation3 [shape = 'f32[128,128]{1,0:T(8,128)}', space=vmem, size = 0x10000, scoped, tag = 'scratch operand']
  #allocation4 [shape = 'f32[128,128]{1,0:T(8,128)}', space=vmem, size = 0x10000, scoped, tag = 'scratch operand']
  #allocation5 [shape = 'f32[128,128]{1,0:T(8,128)}', space=vmem, size = 0x10000, scoped, tag = 'scratch operand']
  #allocation6 [shape = 's32[1]{0}', space=sflag, size = 0x4, scoped, tag = 'scoped memory for model_forward.1']
  #allocation7 [shape = 'u8[512]{0}', space=smem, size = 0x200, scoped, tag = 'prefetched SMEM operand 0']
  #allocation8 [shape = 'u8[512]{0}', space=smem, size = 0x200, scoped, tag = 'prefetched SMEM operand 1']
  %s0 = inlined_call_operand.vmem [shape: s32[128], index: 0, kind: input, shape index: {}]
  %s1 = inlined_call_operand.vmem [shape: s32[128], index: 1, kind: input, shape index: {}]
  %s2 = inlined_call_operand.vmem [shape: bf16[128,128], index: 2, kind: input, shape index: {}]
  %s3 = inlined_call_operand.vmem [shape: bf16[128,128], index: 3, kind: input, shape index: {}]
  %s4 = inlined_call_operand.vmem [shape: bf16[128,128], index: 4, kind: input, shape index: {}]
  %s5 = inlined_call_operand.vmem [shape: bf16[128,128], index: 5, kind: input, shape index: {}]
  %s6 = inlined_call_operand.vmem [shape: f32[8,128], index: 6, kind: output, shape index: {}]
  %s7 = sld [smem:[#allocation0]]
  $region33: #{model_forward.1} parent=0
    _
  %s9 = ssub.s32 1, %s7
  %s10 = scalar_select 0, %s9, %s7
  %s12 = sshll.u32 %s0, 4
  %s13 = int_to_ptr.vmem [resolvable:$true] %s12
  %15 = dma.vmem_to_smem %s13, 16, [#allocation7], [#allocation6]
  %s17 = sshll.u32 %s1, 4
  %s18 = int_to_ptr.vmem [resolvable:$true] %s17
  %20 = dma.vmem_to_smem %s18, 16, [#allocation8], [#allocation6]
  %22 = dma.done [#allocation6], 32
  %23 = sfence
  // Predicated region
  $region2: #{model_forward.1} parent=0 // pred_check
    _
  $region3: #{model_forward.1} parent=0 // pred_check_branch
    %25 = sbr.rel (0) target = $region5
  $region4: #{model_forward.1} parent=0 // pred_region
    _
  $region5: #{model_forward.1} parent=0 // pred_fallthru
    _
  // Predicated region
  $region6: #{model_forward.1} parent=0 // pred_check
    _
  $region7: #{model_forward.1} parent=0 // pred_check_branch
    %27 = sbr.rel (0) target = $region9
  $region8: #{model_forward.1} parent=0 // pred_region
    _
  $region9: #{model_forward.1} parent=0 // pred_fallthru
    _
  // Predicated region
  $region10: #{model_forward.1} parent=0 // pred_check
    _
  $region11: #{model_forward.1} parent=0 // pred_check_branch
    %29 = sbr.rel (0) target = $region13
  $region12: #{model_forward.1} parent=0 // pred_region
    _
  $region13: #{model_forward.1} parent=0 // pred_fallthru
    _
  // Predicated region
  $region14: #{model_forward.1} parent=0 // pred_check
    _
  $region15: #{model_forward.1} parent=0 // pred_check_branch
    %31 = sbr.rel (0) target = $region17
  $region16: #{model_forward.1} parent=0 // pred_region
    _
  $region17: #{model_forward.1} parent=0 // pred_fallthru
    _
  %v32 = vld [vmem:[%s3] sm:$0xf]
  %v33 = vld [vmem:[%s3 + $0x4] sm:$0xf]
  %v34 = vld [vmem:[%s3 + $0x8] sm:$0xf]
  %v35 = vld [vmem:[%s3 + $0xc] sm:$0xf]
  %v36 = vld [vmem:[%s3 + $0x10] sm:$0xf]
  %v37 = vld [vmem:[%s3 + $0x14] sm:$0xf]
  %v38 = vld [vmem:[%s3 + $0x18] sm:$0xf]
  %v39 = vld [vmem:[%s3 + $0x1c] sm:$0xf]
  %v40 = vld [vmem:[%s3 + $0x20] sm:$0xf]
  %v41 = vld [vmem:[%s3 + $0x24] sm:$0xf]
  %v42 = vld [vmem:[%s3 + $0x28] sm:$0xf]
  %v43 = vld [vmem:[%s3 + $0x2c] sm:$0xf]
  %v44 = vld [vmem:[%s3 + $0x30] sm:$0xf]
  %v45 = vld [vmem:[%s3 + $0x34] sm:$0xf]
  %v46 = vld [vmem:[%s3 + $0x38] sm:$0xf]
  %v47 = vld [vmem:[%s3 + $0x3c] sm:$0xf]
  %v48 = vld [vmem:[%s4] sm:$0xf]
  %v49 = vld [vmem:[%s4 + $0x4] sm:$0xf]
  %v50 = vld [vmem:[%s4 + $0x8] sm:$0xf]
  %v51 = vld [vmem:[%s4 + $0xc] sm:$0xf]
  %v52 = vld [vmem:[%s4 + $0x10] sm:$0xf]
  %v53 = vld [vmem:[%s4 + $0x14] sm:$0xf]
  %v54 = vld [vmem:[%s4 + $0x18] sm:$0xf]
  %v55 = vld [vmem:[%s4 + $0x1c] sm:$0xf]
  %v56 = vld [vmem:[%s4 + $0x20] sm:$0xf]
  %v57 = vld [vmem:[%s4 + $0x24] sm:$0xf]
  %v58 = vld [vmem:[%s4 + $0x28] sm:$0xf]
  %v59 = vld [vmem:[%s4 + $0x2c] sm:$0xf]
  %v60 = vld [vmem:[%s4 + $0x30] sm:$0xf]
  %v61 = vld [vmem:[%s4 + $0x34] sm:$0xf]
  %v62 = vld [vmem:[%s4 + $0x38] sm:$0xf]
  %v63 = vld [vmem:[%s4 + $0x3c] sm:$0xf]
  %v80 = vunpack.c.l.b16 %v32
  %v81 = vunpack.c.l.b16 %v33
  %v82 = vunpack.c.l.b16 %v34
  %v83 = vunpack.c.l.b16 %v35
  %v84 = vunpack.c.l.b16 %v36
  %v85 = vunpack.c.l.b16 %v37
  %v86 = vunpack.c.l.b16 %v38
  %v87 = vunpack.c.l.b16 %v39
  %v88 = vunpack.c.l.b16 %v40
  %v89 = vunpack.c.l.b16 %v41
  %v90 = vunpack.c.l.b16 %v42
  %v91 = vunpack.c.l.b16 %v43
  %v92 = vunpack.c.l.b16 %v44
  %v93 = vunpack.c.l.b16 %v45
  %v94 = vunpack.c.l.b16 %v46
  %v95 = vunpack.c.l.b16 %v47
  %v96 = vpack.c.b16 %v81, %v80
  %v97 = vpack.c.b16 %v83, %v82
  %v98 = vpack.c.b16 %v85, %v84
  %v99 = vpack.c.b16 %v87, %v86
  %v100 = vpack.c.b16 %v89, %v88
  %v101 = vpack.c.b16 %v91, %v90
  %v102 = vpack.c.b16 %v93, %v92
  %v103 = vpack.c.b16 %v95, %v94
  %v128 = vunpack.c.l.b16 %v48
  %v129 = vunpack.c.l.b16 %v49
  %v130 = vunpack.c.l.b16 %v50
  %v131 = vunpack.c.l.b16 %v51
  %v132 = vunpack.c.l.b16 %v52
  %v133 = vunpack.c.l.b16 %v53
  %v134 = vunpack.c.l.b16 %v54
  %v135 = vunpack.c.l.b16 %v55
  %v136 = vunpack.c.l.b16 %v56
  %v137 = vunpack.c.l.b16 %v57
  %v138 = vunpack.c.l.b16 %v58
  %v139 = vunpack.c.l.b16 %v59
  %v140 = vunpack.c.l.b16 %v60
  %v141 = vunpack.c.l.b16 %v61
  %v142 = vunpack.c.l.b16 %v62
  %v143 = vunpack.c.l.b16 %v63
  %v144 = vpack.c.b16 %v129, %v128
  %v145 = vpack.c.b16 %v131, %v130
  %v146 = vpack.c.b16 %v133, %v132
  %v147 = vpack.c.b16 %v135, %v134
  %v148 = vpack.c.b16 %v137, %v136
  %v149 = vpack.c.b16 %v139, %v138
  %v150 = vpack.c.b16 %v141, %v140
  %v151 = vpack.c.b16 %v143, %v142
  %160 = vmatpush.bf16.msra.mxu0 %v151
  %161 = vmatpush.bf16.msra.mxu0 %v150
  %162 = vmatpush.bf16.msra.mxu0 %v149
  %163 = vmatpush.bf16.msra.mxu0 %v148
  %164 = vmatpush.bf16.msra.mxu0 %v147
  %165 = vmatpush.bf16.msra.mxu0 %v146
  %166 = vmatpush.bf16.msra.mxu0 %v145
  %167 = vmatpush.bf16.msra.mxu0 %v144
  %168 = vmatmul.bf16.gmra.mxu0 %v96
  %v169 = vpop.f32.mrf.mxu0
  %v170 = vadd.f32 0.0, %v169
  %v171 = vpop.f32.mrf.mxu0
  %v172 = vadd.f32 0.0, %v171
  %173 = vmatmul.bf16.gmra.mxu0 %v97
  %v174 = vpop.f32.mrf.mxu0
  %v175 = vadd.f32 0.0, %v174
  %v176 = vpop.f32.mrf.mxu0
  %v177 = vadd.f32 0.0, %v176
  %178 = vmatmul.bf16.gmra.mxu0 %v98
  %v179 = vpop.f32.mrf.mxu0
  %v180 = vadd.f32 0.0, %v179
  %v181 = vpop.f32.mrf.mxu0
  %v182 = vadd.f32 0.0, %v181
  %183 = vmatmul.bf16.gmra.mxu0 %v99
  %v184 = vpop.f32.mrf.mxu0
  %v185 = vadd.f32 0.0, %v184
  %v186 = vpop.f32.mrf.mxu0
  %v187 = vadd.f32 0.0, %v186
  %188 = vmatmul.bf16.gmra.mxu0 %v100
  %v189 = vpop.f32.mrf.mxu0
  %v190 = vadd.f32 0.0, %v189
  %v191 = vpop.f32.mrf.mxu0
  %v192 = vadd.f32 0.0, %v191
  %193 = vmatmul.bf16.gmra.mxu0 %v101
  %v194 = vpop.f32.mrf.mxu0
  %v195 = vadd.f32 0.0, %v194
  %v196 = vpop.f32.mrf.mxu0
  %v197 = vadd.f32 0.0, %v196
  %198 = vmatmul.bf16.gmra.mxu0 %v102
  %v199 = vpop.f32.mrf.mxu0
  %v200 = vadd.f32 0.0, %v199
  %v201 = vpop.f32.mrf.mxu0
  %v202 = vadd.f32 0.0, %v201
  %203 = vmatmul.bf16.gmra.mxu0 %v103
  %v204 = vpop.f32.mrf.mxu0
  %v205 = vadd.f32 0.0, %v204
  %v206 = vpop.f32.mrf.mxu0
  %v207 = vadd.f32 0.0, %v206
  %208 = vdwg.mxu0
  %v209 = vld [vmem:[%s2] sm:$0xf]
  %v210 = vld [vmem:[%s2 + $0x4] sm:$0xf]
  %v211 = vld [vmem:[%s2 + $0x8] sm:$0xf]
  %v212 = vld [vmem:[%s2 + $0xc] sm:$0xf]
  %v213 = vld [vmem:[%s2 + $0x10] sm:$0xf]
  %v214 = vld [vmem:[%s2 + $0x14] sm:$0xf]
  %v215 = vld [vmem:[%s2 + $0x18] sm:$0xf]
  %v216 = vld [vmem:[%s2 + $0x1c] sm:$0xf]
  %v217 = vld [vmem:[%s2 + $0x20] sm:$0xf]
  %v218 = vld [vmem:[%s2 + $0x24] sm:$0xf]
  %v219 = vld [vmem:[%s2 + $0x28] sm:$0xf]
  %v220 = vld [vmem:[%s2 + $0x2c] sm:$0xf]
  %v221 = vld [vmem:[%s2 + $0x30] sm:$0xf]
  %v222 = vld [vmem:[%s2 + $0x34] sm:$0xf]
  %v223 = vld [vmem:[%s2 + $0x38] sm:$0xf]
  %v224 = vld [vmem:[%s2 + $0x3c] sm:$0xf]
  %v225 = vpack.c.bf16 %v172, %v170
  %v226 = vpack.c.bf16 %v177, %v175
  %v227 = vpack.c.bf16 %v182, %v180
  %v228 = vpack.c.bf16 %v187, %v185
  %v229 = vpack.c.bf16 %v192, %v190
  %v230 = vpack.c.bf16 %v197, %v195
  %v231 = vpack.c.bf16 %v202, %v200
  %v232 = vpack.c.bf16 %v207, %v205
  %v249 = vunpack.c.l.b16 %v209
  %v250 = vunpack.c.l.b16 %v210
  %v251 = vunpack.c.l.b16 %v211
  %v252 = vunpack.c.l.b16 %v212
  %v253 = vunpack.c.l.b16 %v213
  %v254 = vunpack.c.l.b16 %v214
  %v255 = vunpack.c.l.b16 %v215
  %v256 = vunpack.c.l.b16 %v216
  %v257 = vunpack.c.l.b16 %v217
  %v258 = vunpack.c.l.b16 %v218
  %v259 = vunpack.c.l.b16 %v219
  %v260 = vunpack.c.l.b16 %v220
  %v261 = vunpack.c.l.b16 %v221
  %v262 = vunpack.c.l.b16 %v222
  %v263 = vunpack.c.l.b16 %v223
  %v264 = vunpack.c.l.b16 %v224
  %v265 = vpack.c.b16 %v250, %v249
  %v266 = vpack.c.b16 %v252, %v251
  %v267 = vpack.c.b16 %v254, %v253
  %v268 = vpack.c.b16 %v256, %v255
  %v269 = vpack.c.b16 %v258, %v257
  %v270 = vpack.c.b16 %v260, %v259
  %v271 = vpack.c.b16 %v262, %v261
  %v272 = vpack.c.b16 %v264, %v263
  %281 = vmatpush.bf16.msra.mxu0 %v232
  %282 = vmatpush.bf16.msra.mxu0 %v231
  %283 = vmatpush.bf16.msra.mxu0 %v230
  %284 = vmatpush.bf16.msra.mxu0 %v229
  %285 = vmatpush.bf16.msra.mxu0 %v228
  %286 = vmatpush.bf16.msra.mxu0 %v227
  %287 = vmatpush.bf16.msra.mxu0 %v226
  %288 = vmatpush.bf16.msra.mxu0 %v225
  %289 = vmatmul.bf16.gmra.mxu0 %v265
  %v290 = vpop.f32.mrf.mxu0
  %v291 = vadd.f32 0.0, %v290
  %v292 = vpop.f32.mrf.mxu0
  %v293 = vadd.f32 0.0, %v292
  %294 = vmatmul.bf16.gmra.mxu0 %v266
  %v295 = vpop.f32.mrf.mxu0
  %v296 = vadd.f32 0.0, %v295
  %v297 = vpop.f32.mrf.mxu0
  %v298 = vadd.f32 0.0, %v297
  %299 = vmatmul.bf16.gmra.mxu0 %v267
  %v300 = vpop.f32.mrf.mxu0
  %v301 = vadd.f32 0.0, %v300
  %v302 = vpop.f32.mrf.mxu0
  %v303 = vadd.f32 0.0, %v302
  %304 = vmatmul.bf16.gmra.mxu0 %v268
  %v305 = vpop.f32.mrf.mxu0
  %v306 = vadd.f32 0.0, %v305
  %v307 = vpop.f32.mrf.mxu0
  %v308 = vadd.f32 0.0, %v307
  %309 = vmatmul.bf16.gmra.mxu0 %v269
  %v310 = vpop.f32.mrf.mxu0
  %v311 = vadd.f32 0.0, %v310
  %v312 = vpop.f32.mrf.mxu0
  %v313 = vadd.f32 0.0, %v312
  %314 = vmatmul.bf16.gmra.mxu0 %v270
  %v315 = vpop.f32.mrf.mxu0
  %v316 = vadd.f32 0.0, %v315
  %v317 = vpop.f32.mrf.mxu0
  %v318 = vadd.f32 0.0, %v317
  %319 = vmatmul.bf16.gmra.mxu0 %v271
  %v320 = vpop.f32.mrf.mxu0
  %v321 = vadd.f32 0.0, %v320
  %v322 = vpop.f32.mrf.mxu0
  %v323 = vadd.f32 0.0, %v322
  %324 = vmatmul.bf16.gmra.mxu0 %v272
  %v325 = vpop.f32.mrf.mxu0
  %v326 = vadd.f32 0.0, %v325
  %v327 = vpop.f32.mrf.mxu0
  %v328 = vadd.f32 0.0, %v327
  %329 = vdwg.mxu0
  %v330 = vmax.f32 %v291, 0.0
  %v331 = vmax.f32 %v293, 0.0
  %v332 = vmax.f32 %v296, 0.0
  %v333 = vmax.f32 %v298, 0.0
  %v334 = vmax.f32 %v301, 0.0
  %v335 = vmax.f32 %v303, 0.0
  %v336 = vmax.f32 %v306, 0.0
  %v337 = vmax.f32 %v308, 0.0
  %v338 = vmax.f32 %v311, 0.0
  %v339 = vmax.f32 %v313, 0.0
  %v340 = vmax.f32 %v316, 0.0
  %v341 = vmax.f32 %v318, 0.0
  %v342 = vmax.f32 %v321, 0.0
  %v343 = vmax.f32 %v323, 0.0
  %v344 = vmax.f32 %v326, 0.0
  %v345 = vmax.f32 %v328, 0.0
  %346 = vst [vmem:[#allocation2] sm:$0xff] %v330
  %347 = vst [vmem:[#allocation2 + $0x8] sm:$0xff] %v331
  %348 = vst [vmem:[#allocation2 + $0x10] sm:$0xff] %v332
  %349 = vst [vmem:[#allocation2 + $0x18] sm:$0xff] %v333
  %350 = vst [vmem:[#allocation2 + $0x20] sm:$0xff] %v334
  %351 = vst [vmem:[#allocation2 + $0x28] sm:$0xff] %v335
  %352 = vst [vmem:[#allocation2 + $0x30] sm:$0xff] %v336
  %353 = vst [vmem:[#allocation2 + $0x38] sm:$0xff] %v337
  %354 = vst [vmem:[#allocation2 + $0x40] sm:$0xff] %v338
  %355 = vst [vmem:[#allocation2 + $0x48] sm:$0xff] %v339
  %356 = vst [vmem:[#allocation2 + $0x50] sm:$0xff] %v340
  %357 = vst [vmem:[#allocation2 + $0x58] sm:$0xff] %v341
  %358 = vst [vmem:[#allocation2 + $0x60] sm:$0xff] %v342
  %359 = vst [vmem:[#allocation2 + $0x68] sm:$0xff] %v343
  %360 = vst [vmem:[#allocation2 + $0x70] sm:$0xff] %v344
  %361 = vst [vmem:[#allocation2 + $0x78] sm:$0xff] %v345
  %v362 = vpack.c.bf16 %v331, %v330
  %v363 = vpack.c.bf16 %v333, %v332
  %v364 = vpack.c.bf16 %v335, %v334
  %v365 = vpack.c.bf16 %v337, %v336
  %v366 = vpack.c.bf16 %v339, %v338
  %v367 = vpack.c.bf16 %v341, %v340
  %v368 = vpack.c.bf16 %v343, %v342
  %v369 = vpack.c.bf16 %v345, %v344
  %v370 = vld [vmem:[%s5] sm:$0xf]
  %v371 = vld [vmem:[%s5 + $0x4] sm:$0xf]
  %v372 = vld [vmem:[%s5 + $0x8] sm:$0xf]
  %v373 = vld [vmem:[%s5 + $0xc] sm:$0xf]
  %v374 = vld [vmem:[%s5 + $0x10] sm:$0xf]
  %v375 = vld [vmem:[%s5 + $0x14] sm:$0xf]
  %v376 = vld [vmem:[%s5 + $0x18] sm:$0xf]
  %v377 = vld [vmem:[%s5 + $0x1c] sm:$0xf]
  %v378 = vld [vmem:[%s5 + $0x20] sm:$0xf]
  %v379 = vld [vmem:[%s5 + $0x24] sm:$0xf]
  %v380 = vld [vmem:[%s5 + $0x28] sm:$0xf]
  %v381 = vld [vmem:[%s5 + $0x2c] sm:$0xf]
  %v382 = vld [vmem:[%s5 + $0x30] sm:$0xf]
  %v383 = vld [vmem:[%s5 + $0x34] sm:$0xf]
  %v384 = vld [vmem:[%s5 + $0x38] sm:$0xf]
  %v385 = vld [vmem:[%s5 + $0x3c] sm:$0xf]
  %v402 = vunpack.c.l.b16 %v370
  %v403 = vunpack.c.l.b16 %v371
  %v404 = vunpack.c.l.b16 %v372
  %v405 = vunpack.c.l.b16 %v373
  %v406 = vunpack.c.l.b16 %v374
  %v407 = vunpack.c.l.b16 %v375
  %v408 = vunpack.c.l.b16 %v376
  %v409 = vunpack.c.l.b16 %v377
  %v410 = vunpack.c.l.b16 %v378
  %v411 = vunpack.c.l.b16 %v379
  %v412 = vunpack.c.l.b16 %v380
  %v413 = vunpack.c.l.b16 %v381
  %v414 = vunpack.c.l.b16 %v382
  %v415 = vunpack.c.l.b16 %v383
  %v416 = vunpack.c.l.b16 %v384
  %v417 = vunpack.c.l.b16 %v385
  %v418 = vpack.c.b16 %v403, %v402
  %v419 = vpack.c.b16 %v405, %v404
  %v420 = vpack.c.b16 %v407, %v406
  %v421 = vpack.c.b16 %v409, %v408
  %v422 = vpack.c.b16 %v411, %v410
  %v423 = vpack.c.b16 %v413, %v412
  %v424 = vpack.c.b16 %v415, %v414
  %v425 = vpack.c.b16 %v417, %v416
  %434 = vmatpush.bf16.msra.mxu0 %v425
  %435 = vmatpush.bf16.msra.mxu0 %v424
  %436 = vmatpush.bf16.msra.mxu0 %v423
  %437 = vmatpush.bf16.msra.mxu0 %v422
  %438 = vmatpush.bf16.msra.mxu0 %v421
  %439 = vmatpush.bf16.msra.mxu0 %v420
  %440 = vmatpush.bf16.msra.mxu0 %v419
  %441 = vmatpush.bf16.msra.mxu0 %v418
  %442 = vmatmul.bf16.gmra.mxu0 %v362
  %v443 = vpop.f32.mrf.mxu0
  %v444 = vadd.f32 0.0, %v443
  %v445 = vpop.f32.mrf.mxu0
  %v446 = vadd.f32 0.0, %v445
  %447 = vmatmul.bf16.gmra.mxu0 %v363
  %v448 = vpop.f32.mrf.mxu0
  %v449 = vadd.f32 0.0, %v448
  %v450 = vpop.f32.mrf.mxu0
  %v451 = vadd.f32 0.0, %v450
  %452 = vmatmul.bf16.gmra.mxu0 %v364
  %v453 = vpop.f32.mrf.mxu0
  %v454 = vadd.f32 0.0, %v453
  %v455 = vpop.f32.mrf.mxu0
  %v456 = vadd.f32 0.0, %v455
  %457 = vmatmul.bf16.gmra.mxu0 %v365
  %v458 = vpop.f32.mrf.mxu0
  %v459 = vadd.f32 0.0, %v458
  %v460 = vpop.f32.mrf.mxu0
  %v461 = vadd.f32 0.0, %v460
  %462 = vmatmul.bf16.gmra.mxu0 %v366
  %v463 = vpop.f32.mrf.mxu0
  %v464 = vadd.f32 0.0, %v463
  %v465 = vpop.f32.mrf.mxu0
  %v466 = vadd.f32 0.0, %v465
  %467 = vmatmul.bf16.gmra.mxu0 %v367
  %v468 = vpop.f32.mrf.mxu0
  %v469 = vadd.f32 0.0, %v468
  %v470 = vpop.f32.mrf.mxu0
  %v471 = vadd.f32 0.0, %v470
  %472 = vmatmul.bf16.gmra.mxu0 %v368
  %v473 = vpop.f32.mrf.mxu0
  %v474 = vadd.f32 0.0, %v473
  %v475 = vpop.f32.mrf.mxu0
  %v476 = vadd.f32 0.0, %v475
  %477 = vmatmul.bf16.gmra.mxu0 %v369
  %v478 = vpop.f32.mrf.mxu0
  %v479 = vadd.f32 0.0, %v478
  %v480 = vpop.f32.mrf.mxu0
  %v481 = vadd.f32 0.0, %v480
  %482 = vdwg.mxu0
  %483 = vst [vmem:[#allocation3] sm:$0xff] %v444
  %484 = vst [vmem:[#allocation3 + $0x8] sm:$0xff] %v446
  %485 = vst [vmem:[#allocation3 + $0x10] sm:$0xff] %v449
  %486 = vst [vmem:[#allocation3 + $0x18] sm:$0xff] %v451
  %487 = vst [vmem:[#allocation3 + $0x20] sm:$0xff] %v454
  %488 = vst [vmem:[#allocation3 + $0x28] sm:$0xff] %v456
  %489 = vst [vmem:[#allocation3 + $0x30] sm:$0xff] %v459
  %490 = vst [vmem:[#allocation3 + $0x38] sm:$0xff] %v461
  %491 = vst [vmem:[#allocation3 + $0x40] sm:$0xff] %v464
  %492 = vst [vmem:[#allocation3 + $0x48] sm:$0xff] %v466
  %493 = vst [vmem:[#allocation3 + $0x50] sm:$0xff] %v469
  %494 = vst [vmem:[#allocation3 + $0x58] sm:$0xff] %v471
  %495 = vst [vmem:[#allocation3 + $0x60] sm:$0xff] %v474
  %496 = vst [vmem:[#allocation3 + $0x68] sm:$0xff] %v476
  %497 = vst [vmem:[#allocation3 + $0x70] sm:$0xff] %v479
  %498 = vst [vmem:[#allocation3 + $0x78] sm:$0xff] %v481
  loop: start=0, step=1, limit=128
  $region18: #{model_forward.1} parent=0 // loop_pre_header
    _
  $region19: #{model_forward.1} parent=0 // loop_header
    %s500 = sphi 0, %s504
    %p501 = scmp.ge.s32.totalorder %s500, 128
  $region20: #{model_forward.1} parent=0 // loop_header_branch
    %503 = sbr.rel (%p501) target = $region24
  $region21: #{model_forward.1} parent=0 // loop_body
    %s505 = sld [smem:[#allocation7 + %s500]]
    %s506 = scalar_lea.vmem [#allocation3], %s505
    %v507 = vld [vmem:[%s506] sm:$0x1]
    %s508 = scalar_lea.vmem [#allocation4], %s500
    %509 = vst [vmem:[%s508] sm:$0x1] %v507
    %s510 = sld [smem:[#allocation8 + %s500]]
    %s511 = scalar_lea.vmem [#allocation2], %s510
    %v512 = vld [vmem:[%s511] sm:$0x1]
    %s513 = scalar_lea.vmem [#allocation5], %s500
    %514 = vst [vmem:[%s513] sm:$0x1] %v512
  $region22: #{model_forward.1} parent=0 // loop_footer
    %s504 = sadd.s32 1, %s500
  $region23: #{model_forward.1} parent=0 // loop_footer_branch
    %499 = sbr.rel target = $region19
  $region24: #{model_forward.1} parent=0 // loop_exit
    _
  %v515 = vld [vmem:[#allocation4] sm:$0xff]
  %v516 = vld [vmem:[#allocation4 + $0x8] sm:$0xff]
  %v517 = vld [vmem:[#allocation4 + $0x10] sm:$0xff]
  %v518 = vld [vmem:[#allocation4 + $0x18] sm:$0xff]
  %v519 = vld [vmem:[#allocation4 + $0x20] sm:$0xff]
  %v520 = vld [vmem:[#allocation4 + $0x28] sm:$0xff]
  %v521 = vld [vmem:[#allocation4 + $0x30] sm:$0xff]
  %v522 = vld [vmem:[#allocation4 + $0x38] sm:$0xff]
  %v523 = vld [vmem:[#allocation4 + $0x40] sm:$0xff]
  %v524 = vld [vmem:[#allocation4 + $0x48] sm:$0xff]
  %v525 = vld [vmem:[#allocation4 + $0x50] sm:$0xff]
  %v526 = vld [vmem:[#allocation4 + $0x58] sm:$0xff]
  %v527 = vld [vmem:[#allocation4 + $0x60] sm:$0xff]
  %v528 = vld [vmem:[#allocation4 + $0x68] sm:$0xff]
  %v529 = vld [vmem:[#allocation4 + $0x70] sm:$0xff]
  %v530 = vld [vmem:[#allocation4 + $0x78] sm:$0xff]
  %v531 = vld [vmem:[#allocation5] sm:$0xff]
  %v532 = vld [vmem:[#allocation5 + $0x8] sm:$0xff]
  %v533 = vld [vmem:[#allocation5 + $0x10] sm:$0xff]
  %v534 = vld [vmem:[#allocation5 + $0x18] sm:$0xff]
  %v535 = vld [vmem:[#allocation5 + $0x20] sm:$0xff]
  %v536 = vld [vmem:[#allocation5 + $0x28] sm:$0xff]
  %v537 = vld [vmem:[#allocation5 + $0x30] sm:$0xff]
  %v538 = vld [vmem:[#allocation5 + $0x38] sm:$0xff]
  %v539 = vld [vmem:[#allocation5 + $0x40] sm:$0xff]
  %v540 = vld [vmem:[#allocation5 + $0x48] sm:$0xff]
  %v541 = vld [vmem:[#allocation5 + $0x50] sm:$0xff]
  %v542 = vld [vmem:[#allocation5 + $0x58] sm:$0xff]
  %v543 = vld [vmem:[#allocation5 + $0x60] sm:$0xff]
  %v544 = vld [vmem:[#allocation5 + $0x68] sm:$0xff]
  %v545 = vld [vmem:[#allocation5 + $0x70] sm:$0xff]
  %v546 = vld [vmem:[#allocation5 + $0x78] sm:$0xff]
  %v547 = vmul.f32 %v515, %v531
  %v548 = vmul.f32 %v516, %v532
  %v549 = vmul.f32 %v517, %v533
  %v550 = vmul.f32 %v518, %v534
  %v551 = vmul.f32 %v519, %v535
  %v552 = vmul.f32 %v520, %v536
  %v553 = vmul.f32 %v521, %v537
  %v554 = vmul.f32 %v522, %v538
  %v555 = vmul.f32 %v523, %v539
  %v556 = vmul.f32 %v524, %v540
  %v557 = vmul.f32 %v525, %v541
  %v558 = vmul.f32 %v526, %v542
  %v559 = vmul.f32 %v527, %v543
  %v560 = vmul.f32 %v528, %v544
  %v561 = vmul.f32 %v529, %v545
  %v562 = vmul.f32 %v530, %v546
  %563 = vmatpush.xpose.msra.mxu0 %v562
  %564 = vmatpush.xpose.msra.mxu0 %v561
  %565 = vmatpush.xpose.msra.mxu0 %v560
  %566 = vmatpush.xpose.msra.mxu0 %v559
  %567 = vmatpush.xpose.msra.mxu0 %v558
  %568 = vmatpush.xpose.msra.mxu0 %v557
  %569 = vmatpush.xpose.msra.mxu0 %v556
  %570 = vmatpush.xpose.msra.mxu0 %v555
  %571 = vmatpush.xpose.msra.mxu0 %v554
  %572 = vmatpush.xpose.msra.mxu0 %v553
  %573 = vmatpush.xpose.msra.mxu0 %v552
  %574 = vmatpush.xpose.msra.mxu0 %v551
  %575 = vmatpush.xpose.msra.mxu0 %v550
  %576 = vmatpush.xpose.msra.mxu0 %v549
  %577 = vmatpush.xpose.msra.mxu0 %v548
  %578 = vmatpush.xpose.msra.mxu0 %v547
  %579 = vmatmul.f32.gmra.mxu0 1.0
  %v580 = vpop.f32.mrf.mxu0
  %v581 = vadd.f32 0.0, %v580
  %582 = vdwg.mxu0
  %v583 = vxor.u32 %v581, 2147483648
  %v584 = vmul.f32 %v583, 1.442695
  %v585 = vpow.pop %v584
  %v586 = vadd.f32 %v585, 1.0
  %v587 = vrcp.pop %v586
  %v588 = vmul.f32 %v586, %v587
  %v589 = vsub.f32 1.0, %v588
  %v590 = vmul.f32 %v587, %v589
  %v591 = vadd.f32 %v587, %v590
  %vm592 = vweird.f32 %v586
  %vm593 = vweird.f32 %v587
  %vm594 = vmor %vm592, %vm593
  %v595 = vsel %vm594, %v587, %v591
  %v596 = vand.u32 2147483647, %v586
  %vm597 = vcmp.eq.f32.partialorder %v596, 8.507059e+37
  %v598 = vand.u32 %v586, 2147483648
  %v599 = vor.u32 1.1754944e-38, %v598
  %v600 = vsel %vm597, %v599, %v595
  %v601 = vmul.f32 1.0, %v600
  %602 = vst [vmem:[%s6] sm:$0xff] %v601
  // Predicated region
  $region25: #{model_forward.1} parent=0 // pred_check
    _
  $region26: #{model_forward.1} parent=0 // pred_check_branch
    %604 = sbr.rel (0) target = $region28
  $region27: #{model_forward.1} parent=0 // pred_region
    _
  $region28: #{model_forward.1} parent=0 // pred_fallthru
    _
  // Predicated region
  $region29: #{model_forward.1} parent=0 // pred_check
    _
  $region30: #{model_forward.1} parent=0 // pred_check_branch
    %606 = sbr.rel (0) target = $region32
  $region31: #{model_forward.1} parent=0 // pred_region
    _
  $region32: #{model_forward.1} parent=0 // pred_fallthru
    _

</llo_original>
